<compile_context>
chip_gen: v7x
topology: tpu7x:2x2x1
jax: 0.10.0
libtpu: 0.0.40
codegen_flags: <defaults>
</compile_context>

<pallas_src>
import functools

import jax
import jax.numpy as jnp
from jax.experimental import pallas as pl
from jax.experimental.pallas import tpu as pltpu


# ------------------------------ fused kernel -------------------------------

def _fused_forward_kernel(xcol_ref, wcol_ref, scale_ref, shift_ref, attnw_ref,
                          w1_ref, b1_ref, w2_ref, b2_ref, w3_ref, b3_ref,
                          o_ref, *, b_tile, lpad, lout):
    """Processes one batch tile (b_tile samples) per grid step.

    xcol_ref   : (b_tile*lpad, K*Cin) bf16  im2col'd input (seq padded to lpad)
    wcol_ref   : (K*Cin, E)           bf16  conv weight, im2col layout
    scale/shift: (1, E)               f32   folded eval-BatchNorm (+ conv bias)
    attnw_ref  : (E, E)               bf16  AttentionPool projection
    w1/b1      : (E, F)/(1, F)              linear1
    w2/b2      : (F, E)/(1, E)              linear2
    w3/b3      : (E, Opad)/(1, Opad)        prediction head (lane-padded)
    o_ref      : (b_tile, Opad)       f32
    """
    e_dim = wcol_ref.shape[1]

    # ---- Conv1d (valid, stride 1) as ONE im2col matmul + folded BN + ReLU ----
    acc = jnp.dot(xcol_ref[...], wcol_ref[...],
                  preferred_element_type=jnp.float32)             # (b*lpad, E)
    h = jnp.maximum(acc * scale_ref[...] + shift_ref[...], 0.0)   # f32

    # ---- AttentionPool logits: one batched matmul over all rows -------------
    logits = jnp.dot(h.astype(jnp.bfloat16), attnw_ref[...],
                     preferred_element_type=jnp.float32)          # (b*lpad, E)

    # per-sample softmax over the (padded) sequence axis; padded rows masked
    h3 = h.reshape(b_tile, lpad, e_dim)
    lg3 = logits.reshape(b_tile, lpad, e_dim)
    row = jax.lax.broadcasted_iota(jnp.int32, (1, lpad, e_dim), 1)
    lg3 = jnp.where(row < lout, lg3, -1e30)
    m = lg3.max(axis=1, keepdims=True)                            # (b, 1, E)
    p = jnp.exp(lg3 - m)
    inv = pl.reciprocal(p.sum(axis=1, keepdims=True))             # exact
    pooled = jnp.sum(h3 * (p * inv), axis=1)                      # (b, E)

    # ---- batched MLP: linear1 + ReLU -> linear2 + ReLU -> prediction head ---
    a1 = jnp.dot(pooled.astype(jnp.bfloat16), w1_ref[...],
                 preferred_element_type=jnp.float32) + b1_ref[...]
    a1 = jnp.maximum(a1, 0.0)                                     # (b, F)
    a2 = jnp.dot(a1.astype(jnp.bfloat16), w2_ref[...],
                 preferred_element_type=jnp.float32) + b2_ref[...]
    a2 = jnp.maximum(a2, 0.0)                                     # (b, E)
    o_ref[...] = (jnp.dot(a2.astype(jnp.bfloat16), w3_ref[...],
                          preferred_element_type=jnp.float32) + b3_ref[...])


# --------------------------------- wrapper ---------------------------------

def _pick_batch_tile(n, max_tile):
    """Whole batch if it fits, otherwise a multiple-of-8 divisor of n."""
    if n <= max_tile:
        return n
    t = max_tile - (max_tile % 8)
    while t >= 8:
        if n % t == 0:
            return t
        t -= 8
    return n


def forward(params, x, *, max_batch_tile=128):
    """x: (N, Cin, L) — PyTorch nn.Conv1d layout."""
    N, Cin, L = x.shape
    E, _, K = params['conv_w'].shape
    F = params['fc1_w'].shape[0]
    O = params['head_w'].shape[0]
    Lout = L - K + 1
    Lpad = ((Lout + 7) // 8) * 8                    # sublane-aligned sequence
    KC = K * Cin
    Opad = ((max(O, 128) + 127) // 128) * 128       # lane-dense output store

    # batch tiling: at the demo shapes this is the whole batch -> grid=(1,)
    # (for larger N, keep grid >= 2 so v7x's two TensorCores both get work)
    b_tile = _pick_batch_tile(N, max_batch_tile)
    nb = N // b_tile

    # ---- im2col in the wrapper (activation tiny even duplicated x K) --------
    x_nlc = jnp.transpose(x, (0, 2, 1)).astype(jnp.float32)      # (N, L, Cin)
    cols = [x_nlc[:, k:k + Lout, :] for k in range(K)]
    x_col = jnp.concatenate(cols, axis=-1)                       # (N, Lout, K*Cin)
    x_col = jnp.pad(x_col, ((0, 0), (0, Lpad - Lout), (0, 0)))
    x_col = x_col.reshape(N * Lpad, KC).astype(jnp.bfloat16)     # cast ONCE

    # conv weight in im2col layout: w_col[k*Cin + c, e] = conv_w[e, c, k]
    w_col = jnp.transpose(params['conv_w'], (2, 1, 0)).reshape(KC, E)
    w_col = w_col.astype(jnp.bfloat16)

    # eval-mode BatchNorm folded with the conv bias into per-channel scale/shift
    scale = params['bn_gamma'] / jnp.sqrt(params['bn_var'] + 1e-5)
    shift = params['bn_beta'] + (params['conv_b'] - params['bn_mean']) * scale
    scale2 = scale.reshape(1, E).astype(jnp.float32)
    shift2 = shift.reshape(1, E).astype(jnp.float32)

    attn_w = params['attn_w'].astype(jnp.bfloat16)               # (E, E)
    w1 = jnp.transpose(params['fc1_w']).astype(jnp.bfloat16)     # (E, F)
    b1 = params['fc1_b'].reshape(1, F).astype(jnp.float32)
    w2 = jnp.transpose(params['fc2_w']).astype(jnp.bfloat16)     # (F, E)
    b2 = params['fc2_b'].reshape(1, E).astype(jnp.float32)
    w3 = jnp.zeros((E, Opad), jnp.float32).at[:, :O].set(
        jnp.transpose(params['head_w'])).astype(jnp.bfloat16)    # (E, Opad)
    b3 = jnp.zeros((1, Opad), jnp.float32).at[0, :O].set(params['head_b'])

    flops = 2 * N * (Lout * E * KC + Lout * E * E + E * F + F * E + E * O)
    transcendentals = N * Lpad * E
    bytes_accessed = (x_col.size * 2
                      + (w_col.size + attn_w.size + w1.size + w2.size + w3.size) * 2
                      + (scale2.size + shift2.size + b1.size + b2.size + b3.size) * 4
                      + N * Opad * 4)

    def _resident(shape):
        ndim = len(shape)
        return pl.BlockSpec(shape, lambda i, _n=ndim: (0,) * _n)

    kernel = functools.partial(_fused_forward_kernel,
                               b_tile=b_tile, lpad=Lpad, lout=Lout)
    out = pl.pallas_call(
        kernel,
        grid=(nb,),
        in_specs=[
            pl.BlockSpec((b_tile * Lpad, KC), lambda i: (i, 0)),  # im2col rows
            _resident((KC, E)),                                   # conv (im2col) W
            _resident((1, E)), _resident((1, E)),                 # BN scale/shift
            _resident((E, E)),                                    # attention pool W
            _resident((E, F)), _resident((1, F)),                 # linear1
            _resident((F, E)), _resident((1, E)),                 # linear2
            _resident((E, Opad)), _resident((1, Opad)),           # head (padded)
        ],
        out_specs=pl.BlockSpec((b_tile, Opad), lambda i: (i, 0)),
        out_shape=jax.ShapeDtypeStruct((N, Opad), jnp.float32),
        compiler_params=pltpu.CompilerParams(
            dimension_semantics=("parallel",)),
        cost_estimate=pl.CostEstimate(
            flops=flops, transcendentals=transcendentals,
            bytes_accessed=bytes_accessed),
    )(x_col, w_col, scale2, shift2, attn_w, w1, b1, w2, b2, w3, b3)
    return out[:, :O]


# ------------------------------- parameters --------------------------------

def init_params(key, *, in_channels, kernel_size, embed_dim,
                feedforward_dim, output_dim):
    ks = iter(jax.random.split(key, 16))

    def nrm(shape, s):
        return s * jax.random.normal(next(ks), shape, jnp.float32)

    p = {}
    p['conv_w'] = nrm((embed_dim, in_channels, kernel_size), 0.1)
    p['conv_b'] = nrm((embed_dim,), 0.02)
    p['bn_gamma'] = 1.0 + 0.1 * jax.random.normal(next(ks), (embed_dim,),
                                                  jnp.float32)
    p['bn_beta'] = nrm((embed_dim,), 0.05)
    p['bn_mean'] = nrm((embed_dim,), 0.05)
    p['bn_var'] = jax.random.uniform(next(ks), (embed_dim,), jnp.float32,
                                     minval=0.5, maxval=1.5)
    # AttentionPool parameter initialized as identity (as in the PyTorch module)
    # plus a small perturbation so the softmax is non-degenerate.
    p['attn_w'] = (jnp.eye(embed_dim, dtype=jnp.float32)
                   + nrm((embed_dim, embed_dim), 0.02))
    p['fc1_w'] = nrm((feedforward_dim, embed_dim), 0.05)
    p['fc1_b'] = nrm((feedforward_dim,), 0.02)
    p['fc2_w'] = nrm((embed_dim, feedforward_dim), 0.05)
    p['fc2_b'] = nrm((embed_dim,), 0.02)
    p['head_w'] = nrm((output_dim, embed_dim), 0.05)
    p['head_b'] = nrm((output_dim,), 0.02)
    return p


if __name__ == "__main__":
    # small shapes consistent with the module; E/F picked lane-dense (128/256)
    N, Cin, L = 4, 4, 32
    K, E, F, O = 5, 128, 256, 16

    key = jax.random.PRNGKey(0)
    pkey, xkey = jax.random.split(key)
    params = init_params(pkey, in_channels=Cin, kernel_size=K, embed_dim=E,
                         feedforward_dim=F, output_dim=O)
    x = jax.random.normal(xkey, (N, Cin, L), jnp.float32)

    out = jax.jit(forward)(params, x)
    out = jax.block_until_ready(out)
    assert out.shape == (N, O), out.shape
    assert bool(jnp.all(jnp.isfinite(out)))
    print("KERNEL_OK")
</pallas_src>

<mosaic_0001>
module attributes {stable_mosaic.version = 11 : i64} {
  func.func @_fused_forward_kernel(%arg0: i32, %arg1: memref<128x20xbf16, #tpu.memory_space<vmem>>, %arg2: memref<20x128xbf16, #tpu.memory_space<vmem>>, %arg3: memref<1x128xf32, #tpu.memory_space<vmem>>, %arg4: memref<1x128xf32, #tpu.memory_space<vmem>>, %arg5: memref<128x128xbf16, #tpu.memory_space<vmem>>, %arg6: memref<128x256xbf16, #tpu.memory_space<vmem>>, %arg7: memref<1x256xf32, #tpu.memory_space<vmem>>, %arg8: memref<256x128xbf16, #tpu.memory_space<vmem>>, %arg9: memref<1x128xf32, #tpu.memory_space<vmem>>, %arg10: memref<128x128xbf16, #tpu.memory_space<vmem>>, %arg11: memref<1x128xf32, #tpu.memory_space<vmem>>, %arg12: memref<4x128xf32, #tpu.memory_space<vmem>>) attributes {dimension_semantics = [#tpu.dimension_semantics<parallel>], iteration_bounds = array<i64: 1>, scalar_prefetch = 0 : i64, scratch_operands = 0 : i64, tpu.core_type = #tpu.core_type<tc>, window_params = [{transform_indices = @transform_0, window_bounds = array<i64: 128, 20>}, {pipeline_mode = #tpu.pipeline_mode<synchronous>, transform_indices = @transform_1, window_bounds = array<i64: 20, 128>}, {pipeline_mode = #tpu.pipeline_mode<synchronous>, transform_indices = @transform_2, window_bounds = array<i64: 1, 128>}, {pipeline_mode = #tpu.pipeline_mode<synchronous>, transform_indices = @transform_3, window_bounds = array<i64: 1, 128>}, {pipeline_mode = #tpu.pipeline_mode<synchronous>, transform_indices = @transform_4, window_bounds = array<i64: 128, 128>}, {pipeline_mode = #tpu.pipeline_mode<synchronous>, transform_indices = @transform_5, window_bounds = array<i64: 128, 256>}, {pipeline_mode = #tpu.pipeline_mode<synchronous>, transform_indices = @transform_6, window_bounds = array<i64: 1, 256>}, {pipeline_mode = #tpu.pipeline_mode<synchronous>, transform_indices = @transform_7, window_bounds = array<i64: 256, 128>}, {pipeline_mode = #tpu.pipeline_mode<synchronous>, transform_indices = @transform_8, window_bounds = array<i64: 1, 128>}, {pipeline_mode = #tpu.pipeline_mode<synchronous>, transform_indices = @transform_9, window_bounds = array<i64: 128, 128>}, {pipeline_mode = #tpu.pipeline_mode<synchronous>, transform_indices = @transform_10, window_bounds = array<i64: 1, 128>}, {transform_indices = @transform_11, window_bounds = array<i64: 4, 128>}]} {
    %c0 = arith.constant 0 : index
    %c0_0 = arith.constant 0 : index
    %0 = vector.load %arg1[%c0, %c0_0] : memref<128x20xbf16, #tpu.memory_space<vmem>>, vector<128x20xbf16>
    %c0_1 = arith.constant 0 : index
    %c0_2 = arith.constant 0 : index
    %1 = vector.load %arg2[%c0_1, %c0_2] : memref<20x128xbf16, #tpu.memory_space<vmem>>, vector<20x128xbf16>
    %cst = arith.constant dense<0.000000e+00> : vector<128x128xf32>
    %2 = tpu.matmul %0, %1, %cst {dimension_numbers = #tpu.dot_dimension_numbers<[1], [0], [0], [1], [0, 0, 1, 1], [], []>} : vector<128x20xbf16>, vector<20x128xbf16>, vector<128x128xf32> -> vector<128x128xf32>
    %c0_3 = arith.constant 0 : index
    %c0_4 = arith.constant 0 : index
    %3 = vector.load %arg3[%c0_3, %c0_4] : memref<1x128xf32, #tpu.memory_space<vmem>>, vector<1x128xf32>
    %4 = vector.broadcast %3 : vector<1x128xf32> to vector<128x128xf32>
    %5 = arith.mulf %2, %4 : vector<128x128xf32>
    %c0_5 = arith.constant 0 : index
    %c0_6 = arith.constant 0 : index
    %6 = vector.load %arg4[%c0_5, %c0_6] : memref<1x128xf32, #tpu.memory_space<vmem>>, vector<1x128xf32>
    %7 = vector.broadcast %6 : vector<1x128xf32> to vector<128x128xf32>
    %8 = arith.addf %5, %7 : vector<128x128xf32>
    %cst_7 = arith.constant 0.000000e+00 : f32
    %9 = vector.broadcast %cst_7 : f32 to vector<128x128xf32>
    %10 = arith.maximumf %8, %9 : vector<128x128xf32>
    %11 = arith.truncf %10 : vector<128x128xf32> to vector<128x128xbf16>
    %c0_8 = arith.constant 0 : index
    %c0_9 = arith.constant 0 : index
    %12 = vector.load %arg5[%c0_8, %c0_9] : memref<128x128xbf16, #tpu.memory_space<vmem>>, vector<128x128xbf16>
    %cst_10 = arith.constant dense<0.000000e+00> : vector<128x128xf32>
    %13 = tpu.matmul %11, %12, %cst_10 {dimension_numbers = #tpu.dot_dimension_numbers<[1], [0], [0], [1], [0, 0, 1, 1], [], []>} : vector<128x128xbf16>, vector<128x128xbf16>, vector<128x128xf32> -> vector<128x128xf32>
    %14 = vector.shape_cast %10 : vector<128x128xf32> to vector<4x32x128xf32>
    %15 = vector.shape_cast %13 : vector<128x128xf32> to vector<4x32x128xf32>
    %16 = tpu.iota {dimensions = array<i32: 1>} : vector<1x32x128xi32>
    %c28_i32 = arith.constant 28 : i32
    %17 = vector.broadcast %c28_i32 : i32 to vector<1x32x128xi32>
    %18 = arith.cmpi slt, %16, %17 : vector<1x32x128xi32>
    %cst_11 = arith.constant -1.000000e+30 : f32
    %19 = vector.shape_cast %18 : vector<1x32x128xi1> to vector<1x32x128xi1>
    %20 = vector.broadcast %19 : vector<1x32x128xi1> to vector<4x32x128xi1>
    %21 = vector.broadcast %cst_11 : f32 to vector<4x32x128xf32>
    %22 = arith.select %20, %15, %21 : vector<4x32x128xi1>, vector<4x32x128xf32>
    %cst_12 = arith.constant dense<0xFF800000> : vector<4x128xf32>
    %23 = vector.multi_reduction <maximumf>, %22, %cst_12 [1] : vector<4x32x128xf32> to vector<4x128xf32>
    %24 = vector.shape_cast %23 : vector<4x128xf32> to vector<4x1x128xf32>
    %25 = vector.broadcast %24 : vector<4x1x128xf32> to vector<4x32x128xf32>
    %26 = arith.subf %22, %25 : vector<4x32x128xf32>
    %27 = math.exp %26 : vector<4x32x128xf32>
    %cst_13 = arith.constant dense<0.000000e+00> : vector<4x128xf32>
    %28 = vector.multi_reduction <add>, %27, %cst_13 [1] : vector<4x32x128xf32> to vector<4x128xf32>
    %29 = vector.shape_cast %28 : vector<4x128xf32> to vector<4x1x128xf32>
    %30 = tpu.reciprocal %29 : vector<4x1x128xf32> -> vector<4x1x128xf32>
    %31 = vector.broadcast %30 : vector<4x1x128xf32> to vector<4x32x128xf32>
    %32 = arith.mulf %27, %31 : vector<4x32x128xf32>
    %33 = arith.mulf %14, %32 : vector<4x32x128xf32>
    %cst_14 = arith.constant dense<0.000000e+00> : vector<4x128xf32>
    %34 = vector.multi_reduction <add>, %33, %cst_14 [1] : vector<4x32x128xf32> to vector<4x128xf32>
    %35 = arith.truncf %34 : vector<4x128xf32> to vector<4x128xbf16>
    %c0_15 = arith.constant 0 : index
    %c0_16 = arith.constant 0 : index
    %36 = vector.load %arg6[%c0_15, %c0_16] : memref<128x256xbf16, #tpu.memory_space<vmem>>, vector<128x256xbf16>
    %cst_17 = arith.constant dense<0.000000e+00> : vector<4x256xf32>
    %37 = tpu.matmul %35, %36, %cst_17 {dimension_numbers = #tpu.dot_dimension_numbers<[1], [0], [0], [1], [0, 0, 1, 1], [], []>} : vector<4x128xbf16>, vector<128x256xbf16>, vector<4x256xf32> -> vector<4x256xf32>
    %c0_18 = arith.constant 0 : index
    %c0_19 = arith.constant 0 : index
    %38 = vector.load %arg7[%c0_18, %c0_19] : memref<1x256xf32, #tpu.memory_space<vmem>>, vector<1x256xf32>
    %39 = vector.broadcast %38 : vector<1x256xf32> to vector<4x256xf32>
    %40 = arith.addf %37, %39 : vector<4x256xf32>
    %cst_20 = arith.constant 0.000000e+00 : f32
    %41 = vector.broadcast %cst_20 : f32 to vector<4x256xf32>
    %42 = arith.maximumf %40, %41 : vector<4x256xf32>
    %43 = arith.truncf %42 : vector<4x256xf32> to vector<4x256xbf16>
    %c0_21 = arith.constant 0 : index
    %c0_22 = arith.constant 0 : index
    %44 = vector.load %arg8[%c0_21, %c0_22] : memref<256x128xbf16, #tpu.memory_space<vmem>>, vector<256x128xbf16>
    %cst_23 = arith.constant dense<0.000000e+00> : vector<4x128xf32>
    %45 = tpu.matmul %43, %44, %cst_23 {dimension_numbers = #tpu.dot_dimension_numbers<[1], [0], [0], [1], [0, 0, 1, 1], [], []>} : vector<4x256xbf16>, vector<256x128xbf16>, vector<4x128xf32> -> vector<4x128xf32>
    %c0_24 = arith.constant 0 : index
    %c0_25 = arith.constant 0 : index
    %46 = vector.load %arg9[%c0_24, %c0_25] : memref<1x128xf32, #tpu.memory_space<vmem>>, vector<1x128xf32>
    %47 = vector.broadcast %46 : vector<1x128xf32> to vector<4x128xf32>
    %48 = arith.addf %45, %47 : vector<4x128xf32>
    %cst_26 = arith.constant 0.000000e+00 : f32
    %49 = vector.broadcast %cst_26 : f32 to vector<4x128xf32>
    %50 = arith.maximumf %48, %49 : vector<4x128xf32>
    %51 = arith.truncf %50 : vector<4x128xf32> to vector<4x128xbf16>
    %c0_27 = arith.constant 0 : index
    %c0_28 = arith.constant 0 : index
    %52 = vector.load %arg10[%c0_27, %c0_28] : memref<128x128xbf16, #tpu.memory_space<vmem>>, vector<128x128xbf16>
    %cst_29 = arith.constant dense<0.000000e+00> : vector<4x128xf32>
    %53 = tpu.matmul %51, %52, %cst_29 {dimension_numbers = #tpu.dot_dimension_numbers<[1], [0], [0], [1], [0, 0, 1, 1], [], []>} : vector<4x128xbf16>, vector<128x128xbf16>, vector<4x128xf32> -> vector<4x128xf32>
    %c0_30 = arith.constant 0 : index
    %c0_31 = arith.constant 0 : index
    %54 = vector.load %arg11[%c0_30, %c0_31] : memref<1x128xf32, #tpu.memory_space<vmem>>, vector<1x128xf32>
    %55 = vector.broadcast %54 : vector<1x128xf32> to vector<4x128xf32>
    %56 = arith.addf %53, %55 : vector<4x128xf32>
    %c0_32 = arith.constant 0 : index
    %c0_33 = arith.constant 0 : index
    %57 = vector.load %arg12[%c0_32, %c0_33] : memref<4x128xf32, #tpu.memory_space<vmem>>, vector<4x128xf32>
    tpu.vector_store %arg12[%c0_32, %c0_33], %56 {strides = array<i32>} : memref<4x128xf32, #tpu.memory_space<vmem>>, vector<4x128xf32>,
    return
  }
  func.func @transform_0(%arg0: i32) -> (i32, i32) {
    %c0_i32 = arith.constant 0 : i32
    %c0_i32_0 = arith.constant 0 : i32
    return %arg0, %c0_i32 : i32, i32
  }
  func.func @transform_1(%arg0: i32) -> (i32, i32) {
    %c0_i32 = arith.constant 0 : i32
    %c0_i32_0 = arith.constant 0 : i32
    %c0_i32_1 = arith.constant 0 : i32
    return %c0_i32, %c0_i32_0 : i32, i32
  }
  func.func @transform_2(%arg0: i32) -> (i32, i32) {
    %c0_i32 = arith.constant 0 : i32
    %c0_i32_0 = arith.constant 0 : i32
    %c0_i32_1 = arith.constant 0 : i32
    return %c0_i32, %c0_i32_0 : i32, i32
  }
  func.func @transform_3(%arg0: i32) -> (i32, i32) {
    %c0_i32 = arith.constant 0 : i32
    %c0_i32_0 = arith.constant 0 : i32
    %c0_i32_1 = arith.constant 0 : i32
    return %c0_i32, %c0_i32_0 : i32, i32
  }
  func.func @transform_4(%arg0: i32) -> (i32, i32) {
    %c0_i32 = arith.constant 0 : i32
    %c0_i32_0 = arith.constant 0 : i32
    %c0_i32_1 = arith.constant 0 : i32
    return %c0_i32, %c0_i32_0 : i32, i32
  }
  func.func @transform_5(%arg0: i32) -> (i32, i32) {
    %c0_i32 = arith.constant 0 : i32
    %c0_i32_0 = arith.constant 0 : i32
    %c0_i32_1 = arith.constant 0 : i32
    return %c0_i32, %c0_i32_0 : i32, i32
  }
  func.func @transform_6(%arg0: i32) -> (i32, i32) {
    %c0_i32 = arith.constant 0 : i32
    %c0_i32_0 = arith.constant 0 : i32
    %c0_i32_1 = arith.constant 0 : i32
    return %c0_i32, %c0_i32_0 : i32, i32
  }
  func.func @transform_7(%arg0: i32) -> (i32, i32) {
    %c0_i32 = arith.constant 0 : i32
    %c0_i32_0 = arith.constant 0 : i32
    %c0_i32_1 = arith.constant 0 : i32
    return %c0_i32, %c0_i32_0 : i32, i32
  }
  func.func @transform_8(%arg0: i32) -> (i32, i32) {
    %c0_i32 = arith.constant 0 : i32
    %c0_i32_0 = arith.constant 0 : i32
    %c0_i32_1 = arith.constant 0 : i32
    return %c0_i32, %c0_i32_0 : i32, i32
  }
  func.func @transform_9(%arg0: i32) -> (i32, i32) {
    %c0_i32 = arith.constant 0 : i32
    %c0_i32_0 = arith.constant 0 : i32
    %c0_i32_1 = arith.constant 0 : i32
    return %c0_i32, %c0_i32_0 : i32, i32
  }
  func.func @transform_10(%arg0: i32) -> (i32, i32) {
    %c0_i32 = arith.constant 0 : i32
    %c0_i32_0 = arith.constant 0 : i32
    %c0_i32_1 = arith.constant 0 : i32
    return %c0_i32, %c0_i32_0 : i32, i32
  }
  func.func @transform_11(%arg0: i32) -> (i32, i32) {
    %c0_i32 = arith.constant 0 : i32
    %c0_i32_0 = arith.constant 0 : i32
    return %arg0, %c0_i32 : i32, i32
  }
}

</mosaic_0001>

<llo_original>
// kernel: forward.1
$region0: #{forward.1}
  #allocation0 [shape = 'u32[]', space=smem, size = 0x4, offset = 0x4, fixed_abs, tag = 'smem constant byte address 0x4 - core index']
  #allocation1 [shape = 'u32[144,128]{1,0:T(1,128)}', space=vmem, size = 0x12000, scoped, tag = 'internal scratch']
  %s0 = inlined_call_operand.vmem [shape: bf16[128,20], index: 0, kind: input, shape index: {}]
  %s1 = inlined_call_operand.vmem [shape: bf16[20,128], index: 1, kind: input, shape index: {}]
  %s2 = inlined_call_operand.vmem [shape: f32[1,128], index: 2, kind: input, shape index: {}]
  %s3 = inlined_call_operand.vmem [shape: f32[1,128], index: 3, kind: input, shape index: {}]
  %s4 = inlined_call_operand.vmem [shape: bf16[128,128], index: 4, kind: input, shape index: {}]
  %s5 = inlined_call_operand.vmem [shape: bf16[128,256], index: 5, kind: input, shape index: {}]
  %s6 = inlined_call_operand.vmem [shape: f32[1,256], index: 6, kind: input, shape index: {}]
  %s7 = inlined_call_operand.vmem [shape: bf16[256,128], index: 7, kind: input, shape index: {}]
  %s8 = inlined_call_operand.vmem [shape: f32[1,128], index: 8, kind: input, shape index: {}]
  %s9 = inlined_call_operand.vmem [shape: bf16[128,128], index: 9, kind: input, shape index: {}]
  %s10 = inlined_call_operand.vmem [shape: f32[1,128], index: 10, kind: input, shape index: {}]
  %s11 = inlined_call_operand.hbm [shape: f32[4,128], index: 11, kind: output, shape index: {}]
  %s12 = sld [smem:[#allocation0]]
  $region54: #{forward.1} parent=0
    _
  %s14 = ssub.s32 1, %s12
  %s15 = scalar_select 0, %s14, %s12
  $region1: #{forward.1} parent=0
    #allocation2 [shape = 'u8[2048]{0}', space=vmem, size = 0x800, scoped, tag = 'output window, operand 0, single buffered']
    #allocation3 [shape = 's32[1]{0}', space=sflag, size = 0x4, scoped, tag = 'scoped memory for forward.1']
    %16 = vsyncpa [#allocation3], 0
    // Predicated region
    $region2: #{forward.1} parent=1 // pred_check
      _
    $region3: #{forward.1} parent=1 // pred_check_branch
      %18 = sbr.rel (0) target = $region5
    $region4: #{forward.1} parent=1 // pred_region
      _
    $region5: #{forward.1} parent=1 // pred_fallthru
      _
    // Predicated region
    $region6: #{forward.1} parent=1 // pred_check
      _
    $region7: #{forward.1} parent=1 // pred_check_branch
      %20 = sbr.rel (0) target = $region9
    $region8: #{forward.1} parent=1 // pred_region
      _
    $region9: #{forward.1} parent=1 // pred_fallthru
      _
    // Predicated region
    $region10: #{forward.1} parent=1 // pred_check
      _
    $region11: #{forward.1} parent=1 // pred_check_branch
      %22 = sbr.rel (0) target = $region13
    $region12: #{forward.1} parent=1 // pred_region
      _
    $region13: #{forward.1} parent=1 // pred_fallthru
      _
    // Predicated region
    $region14: #{forward.1} parent=1 // pred_check
      _
    $region15: #{forward.1} parent=1 // pred_check_branch
      %24 = sbr.rel (0) target = $region17
    $region16: #{forward.1} parent=1 // pred_region
      _
    $region17: #{forward.1} parent=1 // pred_fallthru
      _
    // Predicated region
    $region18: #{forward.1} parent=1 // pred_check
      _
    $region19: #{forward.1} parent=1 // pred_check_branch
      %26 = sbr.rel (0) target = $region21
    $region20: #{forward.1} parent=1 // pred_region
      _
    $region21: #{forward.1} parent=1 // pred_fallthru
      _
    // Predicated region
    $region22: #{forward.1} parent=1 // pred_check
      _
    $region23: #{forward.1} parent=1 // pred_check_branch
      %28 = sbr.rel (0) target = $region25
    $region24: #{forward.1} parent=1 // pred_region
      _
    $region25: #{forward.1} parent=1 // pred_fallthru
      _
    // Predicated region
    $region26: #{forward.1} parent=1 // pred_check
      _
    $region27: #{forward.1} parent=1 // pred_check_branch
      %30 = sbr.rel (0) target = $region29
    $region28: #{forward.1} parent=1 // pred_region
      _
    $region29: #{forward.1} parent=1 // pred_fallthru
      _
    // Predicated region
    $region30: #{forward.1} parent=1 // pred_check
      _
    $region31: #{forward.1} parent=1 // pred_check_branch
      %32 = sbr.rel (0) target = $region33
    $region32: #{forward.1} parent=1 // pred_region
      _
    $region33: #{forward.1} parent=1 // pred_fallthru
      _
    // Predicated region
    $region34: #{forward.1} parent=1 // pred_check
      _
    $region35: #{forward.1} parent=1 // pred_check_branch
      %34 = sbr.rel (0) target = $region37
    $region36: #{forward.1} parent=1 // pred_region
      _
    $region37: #{forward.1} parent=1 // pred_fallthru
      _
    // Predicated region
    $region38: #{forward.1} parent=1 // pred_check
      _
    $region39: #{forward.1} parent=1 // pred_check_branch
      %36 = sbr.rel (0) target = $region41
    $region40: #{forward.1} parent=1 // pred_region
      _
    $region41: #{forward.1} parent=1 // pred_fallthru
      _
    // Predicated region
    $region42: #{forward.1} parent=1 // pred_check
      _
    $region43: #{forward.1} parent=1 // pred_check_branch
      %38 = sbr.rel (0) target = $region45
    $region44: #{forward.1} parent=1 // pred_region
      _
    $region45: #{forward.1} parent=1 // pred_fallthru
      _
    %v40 = vld [vmem:[%s0] sm:$0xf]
    %v41 = vld [vmem:[%s0 + $0x4] sm:$0xf]
    %v42 = vld [vmem:[%s0 + $0x8] sm:$0xf]
    %v43 = vld [vmem:[%s0 + $0xc] sm:$0xf]
    %v44 = vld [vmem:[%s0 + $0x10] sm:$0xf]
    %v45 = vld [vmem:[%s0 + $0x14] sm:$0xf]
    %v46 = vld [vmem:[%s0 + $0x18] sm:$0xf]
    %v47 = vld [vmem:[%s0 + $0x1c] sm:$0xf]
    %v48 = vld [vmem:[%s0 + $0x20] sm:$0xf]
    %v49 = vld [vmem:[%s0 + $0x24] sm:$0xf]
    %v50 = vld [vmem:[%s0 + $0x28] sm:$0xf]
    %v51 = vld [vmem:[%s0 + $0x2c] sm:$0xf]
    %v52 = vld [vmem:[%s0 + $0x30] sm:$0xf]
    %v53 = vld [vmem:[%s0 + $0x34] sm:$0xf]
    %v54 = vld [vmem:[%s0 + $0x38] sm:$0xf]
    %v55 = vld [vmem:[%s0 + $0x3c] sm:$0xf]
    %v56 = vld [vmem:[%s1] sm:$0xf]
    %v57 = vld [vmem:[%s1 + $0x4] sm:$0xf]
    %v58 = vld [vmem:[%s1 + $0x8] sm:$0x3]
    %v75 = vunpack.c.l.b16 %v40
    %v76 = vunpack.c.l.b16 %v41
    %v77 = vunpack.c.l.b16 %v42
    %v78 = vunpack.c.l.b16 %v43
    %v79 = vunpack.c.l.b16 %v44
    %v80 = vunpack.c.l.b16 %v45
    %v81 = vunpack.c.l.b16 %v46
    %v82 = vunpack.c.l.b16 %v47
    %v83 = vunpack.c.l.b16 %v48
    %v84 = vunpack.c.l.b16 %v49
    %v85 = vunpack.c.l.b16 %v50
    %v86 = vunpack.c.l.b16 %v51
    %v87 = vunpack.c.l.b16 %v52
    %v88 = vunpack.c.l.b16 %v53
    %v89 = vunpack.c.l.b16 %v54
    %v90 = vunpack.c.l.b16 %v55
    %v91 = vpack.c.b16 %v76, %v75
    %v92 = vpack.c.b16 %v78, %v77
    %v93 = vpack.c.b16 %v80, %v79
    %v94 = vpack.c.b16 %v82, %v81
    %v95 = vpack.c.b16 %v84, %v83
    %v96 = vpack.c.b16 %v86, %v85
    %v97 = vpack.c.b16 %v88, %v87
    %v98 = vpack.c.b16 %v90, %v89
    %v102 = vunpack.c.l.b16 %v56
    %v103 = vunpack.c.l.b16 %v57
    %v104 = vunpack.c.l.b16 %v58
    %v105 = vpack.c.b16 %v103, %v102
    %v106 = vpack.c.b16 %v104, %v104
    %vm108 = vcmask 162816
    %v110 = vsel %vm108, %v91, 0
    %v113 = vsel %vm108, %v92, 0
    %v116 = vsel %vm108, %v93, 0
    %v119 = vsel %vm108, %v94, 0
    %v122 = vsel %vm108, %v95, 0
    %v125 = vsel %vm108, %v96, 0
    %v128 = vsel %vm108, %v97, 0
    %v131 = vsel %vm108, %v98, 0
    %vm133 = vcmask 1041408
    %v135 = vsel %vm133, %v106, 0
    %137 = vmatprep.subr.bf16.mxu0 0
    %138 = vmatpush1.bf16.msra.mxu0 %v105
    %139 = vmatprep.subr.bf16.mxu0 0
    %140 = vmatpush1.bf16.msra.mxu0 %v135
    %141 = vmatprep.subr.bf16.mxu0 0
    %142 = vmatpush1.bf16.msra.mxu0 0
    %143 = vmatprep.subr.bf16.mxu0 0
    %144 = vmatpush1.bf16.msra.mxu0 0
    %145 = vmatprep.subr.bf16.mxu0 0
    %146 = vmatpush1.bf16.msra.mxu0 0
    %147 = vmatprep.subr.bf16.mxu0 0
    %148 = vmatpush1.bf16.msra.mxu0 0
    %149 = vmatprep.subr.bf16.mxu0 0
    %150 = vmatpush1.bf16.msra.mxu0 0
    %151 = vmatprep.subr.bf16.mxu0 0
    %152 = vmatpush1.bf16.msra.mxu0 0
    %153 = vmatprep.subr.bf16.mxu0 0
    %154 = vmatpush1.bf16.msra.mxu0 0
    %155 = vmatprep.subr.bf16.mxu0 0
    %156 = vmatpush1.bf16.msra.mxu0 0
    %157 = vmatprep.subr.bf16.mxu0 0
    %158 = vmatpush1.bf16.msra.mxu0 0
    %159 = vmatprep.subr.bf16.mxu0 0
    %160 = vmatpush1.bf16.msra.mxu0 0
    %161 = vmatprep.subr.bf16.mxu0 0
    %162 = vmatpush1.bf16.msra.mxu0 0
    %163 = vmatprep.subr.bf16.mxu0 0
    %164 = vmatpush1.bf16.msra.mxu0 0
    %165 = vmatprep.subr.bf16.mxu0 0
    %166 = vmatpush1.bf16.msra.mxu0 0
    %167 = vmatprep.subr.bf16.mxu0 0
    %168 = vmatpush1.bf16.msra.mxu0 0
    %169 = vmatprep.mubr.bf16.mxu0 0
    %170 = vmatmul.mubr.bf16.gmra.mrb[0].mxu0 %v110
    %v171 = vpop.f32.mrb[0].mxu0
    %v172 = vadd.f32 0.0, %v171
    %v173 = vpop.f32.mrb[0].mxu0
    %v174 = vpop.f32.mrb[0].mxu0
    %v175 = vadd.f32 0.0, %v174
    %v176 = vpop.f32.mrb[0].mxu0
    %177 = vmatprep.mubr.bf16.mxu0 0
    %178 = vmatmul.mubr.bf16.gmra.mrb[0].mxu0 %v113
    %v179 = vpop.f32.mrb[0].mxu0
    %v180 = vadd.f32 0.0, %v179
    %v181 = vpop.f32.mrb[0].mxu0
    %v182 = vpop.f32.mrb[0].mxu0
    %v183 = vadd.f32 0.0, %v182
    %v184 = vpop.f32.mrb[0].mxu0
    %185 = vmatprep.mubr.bf16.mxu0 0
    %186 = vmatmul.mubr.bf16.gmra.mrb[0].mxu0 %v116
    %v187 = vpop.f32.mrb[0].mxu0
    %v188 = vadd.f32 0.0, %v187
    %v189 = vpop.f32.mrb[0].mxu0
    %v190 = vpop.f32.mrb[0].mxu0
    %v191 = vadd.f32 0.0, %v190
    %v192 = vpop.f32.mrb[0].mxu0
    %193 = vmatprep.mubr.bf16.mxu0 0
    %194 = vmatmul.mubr.bf16.gmra.mrb[0].mxu0 %v119
    %v195 = vpop.f32.mrb[0].mxu0
    %v196 = vadd.f32 0.0, %v195
    %v197 = vpop.f32.mrb[0].mxu0
    %v198 = vpop.f32.mrb[0].mxu0
    %v199 = vadd.f32 0.0, %v198
    %v200 = vpop.f32.mrb[0].mxu0
    %201 = vmatprep.mubr.bf16.mxu0 0
    %202 = vmatmul.mubr.bf16.gmra.mrb[0].mxu0 %v122
    %v203 = vpop.f32.mrb[0].mxu0
    %v204 = vadd.f32 0.0, %v203
    %v205 = vpop.f32.mrb[0].mxu0
    %v206 = vpop.f32.mrb[0].mxu0
    %v207 = vadd.f32 0.0, %v206
    %v208 = vpop.f32.mrb[0].mxu0
    %209 = vmatprep.mubr.bf16.mxu0 0
    %210 = vmatmul.mubr.bf16.gmra.mrb[0].mxu0 %v125
    %v211 = vpop.f32.mrb[0].mxu0
    %v212 = vadd.f32 0.0, %v211
    %v213 = vpop.f32.mrb[0].mxu0
    %v214 = vpop.f32.mrb[0].mxu0
    %v215 = vadd.f32 0.0, %v214
    %v216 = vpop.f32.mrb[0].mxu0
    %217 = vmatprep.mubr.bf16.mxu0 0
    %218 = vmatmul.mubr.bf16.gmra.mrb[0].mxu0 %v128
    %v219 = vpop.f32.mrb[0].mxu0
    %v220 = vadd.f32 0.0, %v219
    %v221 = vpop.f32.mrb[0].mxu0
    %v222 = vpop.f32.mrb[0].mxu0
    %v223 = vadd.f32 0.0, %v222
    %v224 = vpop.f32.mrb[0].mxu0
    %225 = vmatprep.mubr.bf16.mxu0 0
    %226 = vmatmul.mubr.bf16.gmra.mrb[0].mxu0 %v131
    %v227 = vpop.f32.mrb[0].mxu0
    %v228 = vadd.f32 0.0, %v227
    %v229 = vpop.f32.mrb[0].mxu0
    %v230 = vpop.f32.mrb[0].mxu0
    %v231 = vadd.f32 0.0, %v230
    %v232 = vpop.f32.mrb[0].mxu0
    %233 = vdwg.mxu0
    %v234 = vld [vmem:[%s2] sm:$0x1]
    %v236 = vlaneseq
    %v237 = vshrl.u32 %v236, 7
    %v238 = vsub.s32 0, %v237
    %v239 = vrot.slane %v234, %v238
    %v241 = vmul.f32 %v172, %v239
    %v242 = vmul.f32 %v175, %v239
    %v243 = vmul.f32 %v180, %v239
    %v244 = vmul.f32 %v183, %v239
    %v245 = vmul.f32 %v188, %v239
    %v246 = vmul.f32 %v191, %v239
    %v247 = vmul.f32 %v196, %v239
    %v248 = vmul.f32 %v199, %v239
    %v249 = vmul.f32 %v204, %v239
    %v250 = vmul.f32 %v207, %v239
    %v251 = vmul.f32 %v212, %v239
    %v252 = vmul.f32 %v215, %v239
    %v253 = vmul.f32 %v220, %v239
    %v254 = vmul.f32 %v223, %v239
    %v255 = vmul.f32 %v228, %v239
    %v256 = vmul.f32 %v231, %v239
    %v257 = vld [vmem:[%s3] sm:$0x1]
    %v259 = vlaneseq
    %v260 = vshrl.u32 %v259, 7
    %v261 = vsub.s32 0, %v260
    %v262 = vrot.slane %v257, %v261
    %v264 = vadd.f32 %v241, %v262
    %v265 = vadd.f32 %v242, %v262
    %v266 = vadd.f32 %v243, %v262
    %v267 = vadd.f32 %v244, %v262
    %v268 = vadd.f32 %v245, %v262
    %v269 = vadd.f32 %v246, %v262
    %v270 = vadd.f32 %v247, %v262
    %v271 = vadd.f32 %v248, %v262
    %v272 = vadd.f32 %v249, %v262
    %v273 = vadd.f32 %v250, %v262
    %v274 = vadd.f32 %v251, %v262
    %v275 = vadd.f32 %v252, %v262
    %v276 = vadd.f32 %v253, %v262
    %v277 = vadd.f32 %v254, %v262
    %v278 = vadd.f32 %v255, %v262
    %v279 = vadd.f32 %v256, %v262
    %v280 = vmax.f32 %v264, 0.0
    %v281 = vmax.f32 %v265, 0.0
    %v282 = vmax.f32 %v266, 0.0
    %v283 = vmax.f32 %v267, 0.0
    %v284 = vmax.f32 %v268, 0.0
    %v285 = vmax.f32 %v269, 0.0
    %v286 = vmax.f32 %v270, 0.0
    %v287 = vmax.f32 %v271, 0.0
    %v288 = vmax.f32 %v272, 0.0
    %v289 = vmax.f32 %v273, 0.0
    %v290 = vmax.f32 %v274, 0.0
    %v291 = vmax.f32 %v275, 0.0
    %v292 = vmax.f32 %v276, 0.0
    %v293 = vmax.f32 %v277, 0.0
    %v294 = vmax.f32 %v278, 0.0
    %v295 = vmax.f32 %v279, 0.0
    %v296 = vpack.c.bf16 %v281, %v280
    %v297 = vpack.c.bf16 %v283, %v282
    %v298 = vpack.c.bf16 %v285, %v284
    %v299 = vpack.c.bf16 %v287, %v286
    %v300 = vpack.c.bf16 %v289, %v288
    %v301 = vpack.c.bf16 %v291, %v290
    %v302 = vpack.c.bf16 %v293, %v292
    %v303 = vpack.c.bf16 %v295, %v294
    %v304 = vld [vmem:[%s4] sm:$0xf]
    %v305 = vld [vmem:[%s4 + $0x4] sm:$0xf]
    %v306 = vld [vmem:[%s4 + $0x8] sm:$0xf]
    %v307 = vld [vmem:[%s4 + $0xc] sm:$0xf]
    %v308 = vld [vmem:[%s4 + $0x10] sm:$0xf]
    %v309 = vld [vmem:[%s4 + $0x14] sm:$0xf]
    %v310 = vld [vmem:[%s4 + $0x18] sm:$0xf]
    %v311 = vld [vmem:[%s4 + $0x1c] sm:$0xf]
    %v312 = vld [vmem:[%s4 + $0x20] sm:$0xf]
    %v313 = vld [vmem:[%s4 + $0x24] sm:$0xf]
    %v314 = vld [vmem:[%s4 + $0x28] sm:$0xf]
    %v315 = vld [vmem:[%s4 + $0x2c] sm:$0xf]
    %v316 = vld [vmem:[%s4 + $0x30] sm:$0xf]
    %v317 = vld [vmem:[%s4 + $0x34] sm:$0xf]
    %v318 = vld [vmem:[%s4 + $0x38] sm:$0xf]
    %v319 = vld [vmem:[%s4 + $0x3c] sm:$0xf]
    %v336 = vunpack.c.l.b16 %v304
    %v337 = vunpack.c.l.b16 %v305
    %v338 = vunpack.c.l.b16 %v306
    %v339 = vunpack.c.l.b16 %v307
    %v340 = vunpack.c.l.b16 %v308
    %v341 = vunpack.c.l.b16 %v309
    %v342 = vunpack.c.l.b16 %v310
    %v343 = vunpack.c.l.b16 %v311
    %v344 = vunpack.c.l.b16 %v312
    %v345 = vunpack.c.l.b16 %v313
    %v346 = vunpack.c.l.b16 %v314
    %v347 = vunpack.c.l.b16 %v315
    %v348 = vunpack.c.l.b16 %v316
    %v349 = vunpack.c.l.b16 %v317
    %v350 = vunpack.c.l.b16 %v318
    %v351 = vunpack.c.l.b16 %v319
    %v352 = vpack.c.b16 %v337, %v336
    %v353 = vpack.c.b16 %v339, %v338
    %v354 = vpack.c.b16 %v341, %v340
    %v355 = vpack.c.b16 %v343, %v342
    %v356 = vpack.c.b16 %v345, %v344
    %v357 = vpack.c.b16 %v347, %v346
    %v358 = vpack.c.b16 %v349, %v348
    %v359 = vpack.c.b16 %v351, %v350
    %368 = vmatprep.subr.bf16.mxu0 0
    %369 = vmatpush1.bf16.msra.mxu0 %v352
    %370 = vmatprep.subr.bf16.mxu0 0
    %371 = vmatpush1.bf16.msra.mxu0 %v353
    %372 = vmatprep.subr.bf16.mxu0 0
    %373 = vmatpush1.bf16.msra.mxu0 %v354
    %374 = vmatprep.subr.bf16.mxu0 0
    %375 = vmatpush1.bf16.msra.mxu0 %v355
    %376 = vmatprep.subr.bf16.mxu0 0
    %377 = vmatpush1.bf16.msra.mxu0 %v356
    %378 = vmatprep.subr.bf16.mxu0 0
    %379 = vmatpush1.bf16.msra.mxu0 %v357
    %380 = vmatprep.subr.bf16.mxu0 0
    %381 = vmatpush1.bf16.msra.mxu0 %v358
    %382 = vmatprep.subr.bf16.mxu0 0
    %383 = vmatpush1.bf16.msra.mxu0 %v359
    %384 = vmatprep.subr.bf16.mxu0 0
    %385 = vmatpush1.bf16.msra.mxu0 0
    %386 = vmatprep.subr.bf16.mxu0 0
    %387 = vmatpush1.bf16.msra.mxu0 0
    %388 = vmatprep.subr.bf16.mxu0 0
    %389 = vmatpush1.bf16.msra.mxu0 0
    %390 = vmatprep.subr.bf16.mxu0 0
    %391 = vmatpush1.bf16.msra.mxu0 0
    %392 = vmatprep.subr.bf16.mxu0 0
    %393 = vmatpush1.bf16.msra.mxu0 0
    %394 = vmatprep.subr.bf16.mxu0 0
    %395 = vmatpush1.bf16.msra.mxu0 0
    %396 = vmatprep.subr.bf16.mxu0 0
    %397 = vmatpush1.bf16.msra.mxu0 0
    %398 = vmatprep.subr.bf16.mxu0 0
    %399 = vmatpush1.bf16.msra.mxu0 0
    %400 = vmatprep.mubr.bf16.mxu0 0
    %401 = vmatmul.mubr.bf16.gmra.mrb[0].mxu0 %v296
    %v402 = vpop.f32.mrb[0].mxu0
    %v403 = vadd.f32 0.0, %v402
    %v404 = vpop.f32.mrb[0].mxu0
    %v405 = vpop.f32.mrb[0].mxu0
    %v406 = vadd.f32 0.0, %v405
    %v407 = vpop.f32.mrb[0].mxu0
    %408 = vmatprep.mubr.bf16.mxu0 0
    %409 = vmatmul.mubr.bf16.gmra.mrb[0].mxu0 %v297
    %v410 = vpop.f32.mrb[0].mxu0
    %v411 = vadd.f32 0.0, %v410
    %v412 = vpop.f32.mrb[0].mxu0
    %v413 = vpop.f32.mrb[0].mxu0
    %v414 = vadd.f32 0.0, %v413
    %v415 = vpop.f32.mrb[0].mxu0
    %416 = vmatprep.mubr.bf16.mxu0 0
    %417 = vmatmul.mubr.bf16.gmra.mrb[0].mxu0 %v298
    %v418 = vpop.f32.mrb[0].mxu0
    %v419 = vadd.f32 0.0, %v418
    %v420 = vpop.f32.mrb[0].mxu0
    %v421 = vpop.f32.mrb[0].mxu0
    %v422 = vadd.f32 0.0, %v421
    %v423 = vpop.f32.mrb[0].mxu0
    %424 = vmatprep.mubr.bf16.mxu0 0
    %425 = vmatmul.mubr.bf16.gmra.mrb[0].mxu0 %v299
    %v426 = vpop.f32.mrb[0].mxu0
    %v427 = vadd.f32 0.0, %v426
    %v428 = vpop.f32.mrb[0].mxu0
    %v429 = vpop.f32.mrb[0].mxu0
    %v430 = vadd.f32 0.0, %v429
    %v431 = vpop.f32.mrb[0].mxu0
    %432 = vmatprep.mubr.bf16.mxu0 0
    %433 = vmatmul.mubr.bf16.gmra.mrb[0].mxu0 %v300
    %v434 = vpop.f32.mrb[0].mxu0
    %v435 = vadd.f32 0.0, %v434
    %v436 = vpop.f32.mrb[0].mxu0
    %v437 = vpop.f32.mrb[0].mxu0
    %v438 = vadd.f32 0.0, %v437
    %v439 = vpop.f32.mrb[0].mxu0
    %440 = vmatprep.mubr.bf16.mxu0 0
    %441 = vmatmul.mubr.bf16.gmra.mrb[0].mxu0 %v301
    %v442 = vpop.f32.mrb[0].mxu0
    %v443 = vadd.f32 0.0, %v442
    %v444 = vpop.f32.mrb[0].mxu0
    %v445 = vpop.f32.mrb[0].mxu0
    %v446 = vadd.f32 0.0, %v445
    %v447 = vpop.f32.mrb[0].mxu0
    %448 = vmatprep.mubr.bf16.mxu0 0
    %449 = vmatmul.mubr.bf16.gmra.mrb[0].mxu0 %v302
    %v450 = vpop.f32.mrb[0].mxu0
    %v451 = vadd.f32 0.0, %v450
    %v452 = vpop.f32.mrb[0].mxu0
    %v453 = vpop.f32.mrb[0].mxu0
    %v454 = vadd.f32 0.0, %v453
    %v455 = vpop.f32.mrb[0].mxu0
    %456 = vmatprep.mubr.bf16.mxu0 0
    %457 = vmatmul.mubr.bf16.gmra.mrb[0].mxu0 %v303
    %v458 = vpop.f32.mrb[0].mxu0
    %v459 = vadd.f32 0.0, %v458
    %v460 = vpop.f32.mrb[0].mxu0
    %v461 = vpop.f32.mrb[0].mxu0
    %v462 = vadd.f32 0.0, %v461
    %v463 = vpop.f32.mrb[0].mxu0
    %464 = vdwg.mxu0
    %v465 = vlaneseq
    %v466 = vshrl.u32 %v465, 7
    %v467 = vadd.s32 %v466, 8
    %v468 = vadd.s32 %v466, 16
    %v469 = vadd.s32 %v466, 24
    %vm470 = vcmp.lt.s32.totalorder %v466, 28
    %vm471 = vcmp.lt.s32.totalorder %v467, 28
    %vm472 = vcmp.lt.s32.totalorder %v468, 28
    %vm473 = vcmp.lt.s32.totalorder %v469, 28
    %v474 = vsel %vm470, 1, 0
    %v475 = vsel %vm471, 1, 0
    %v476 = vsel %vm472, 1, 0
    %v477 = vsel %vm473, 1, 0
    %vm478 = vcmp.eq.s32.totalorder %v474, 1
    %vm479 = vcmp.eq.s32.totalorder %v475, 1
    %vm480 = vcmp.eq.s32.totalorder %v476, 1
    %vm481 = vcmp.eq.s32.totalorder %v477, 1
    %v482 = vsel %vm478, %v403, -1e+30
    %v483 = vsel %vm479, %v406, -1e+30
    %v484 = vsel %vm480, %v411, -1e+30
    %v485 = vsel %vm481, %v414, -1e+30
    %v486 = vsel %vm478, %v419, -1e+30
    %v487 = vsel %vm479, %v422, -1e+30
    %v488 = vsel %vm480, %v427, -1e+30
    %v489 = vsel %vm481, %v430, -1e+30
    %v490 = vsel %vm478, %v435, -1e+30
    %v491 = vsel %vm479, %v438, -1e+30
    %v492 = vsel %vm480, %v443, -1e+30
    %v493 = vsel %vm481, %v446, -1e+30
    %v494 = vsel %vm478, %v451, -1e+30
    %v495 = vsel %vm479, %v454, -1e+30
    %v496 = vsel %vm480, %v459, -1e+30
    %v497 = vsel %vm481, %v462, -1e+30
    %v498 = vmax.f32 %v482, %v483
    %v499 = vmax.f32 %v498, %v484
    %v500 = vmax.f32 %v499, %v485
    %v501 = vrot.slane %v500, 4
    %v502 = vmax.f32 %v500, %v501
    %v503 = vrot.slane %v502, 2
    %v504 = vmax.f32 %v502, %v503
    %v505 = vrot.slane %v504, 1
    %v506 = vmax.f32 %v504, %v505
    %v507 = vmax.f32 %v486, %v487
    %v508 = vmax.f32 %v507, %v488
    %v509 = vmax.f32 %v508, %v489
    %v510 = vrot.slane %v509, 4
    %v511 = vmax.f32 %v509, %v510
    %v512 = vrot.slane %v511, 2
    %v513 = vmax.f32 %v511, %v512
    %v514 = vrot.slane %v513, 1
    %v515 = vmax.f32 %v513, %v514
    %v516 = vmax.f32 %v490, %v491
    %v517 = vmax.f32 %v516, %v492
    %v518 = vmax.f32 %v517, %v493
    %v519 = vrot.slane %v518, 4
    %v520 = vmax.f32 %v518, %v519
    %v521 = vrot.slane %v520, 2
    %v522 = vmax.f32 %v520, %v521
    %v523 = vrot.slane %v522, 1
    %v524 = vmax.f32 %v522, %v523
    %v525 = vmax.f32 %v494, %v495
    %v526 = vmax.f32 %v525, %v496
    %v527 = vmax.f32 %v526, %v497
    %v528 = vrot.slane %v527, 4
    %v529 = vmax.f32 %v527, %v528
    %v530 = vrot.slane %v529, 2
    %v531 = vmax.f32 %v529, %v530
    %v532 = vrot.slane %v531, 1
    %v533 = vmax.f32 %v531, %v532
    %v534 = vsub.f32 %v482, %v506
    %v535 = vsub.f32 %v483, %v506
    %v536 = vsub.f32 %v484, %v506
    %v537 = vsub.f32 %v485, %v506
    %v538 = vsub.f32 %v486, %v515
    %v539 = vsub.f32 %v487, %v515
    %v540 = vsub.f32 %v488, %v515
    %v541 = vsub.f32 %v489, %v515
    %v542 = vsub.f32 %v490, %v524
    %v543 = vsub.f32 %v491, %v524
    %v544 = vsub.f32 %v492, %v524
    %v545 = vsub.f32 %v493, %v524
    %v546 = vsub.f32 %v494, %v533
    %v547 = vsub.f32 %v495, %v533
    %v548 = vsub.f32 %v496, %v533
    %v549 = vsub.f32 %v497, %v533
    %v550 = vmul.f32 %v534, 1.442695
    %v551 = vpow.pop %v550
    %v552 = vmul.f32 %v535, 1.442695
    %v553 = vpow.pop %v552
    %v554 = vmul.f32 %v536, 1.442695
    %v555 = vpow.pop %v554
    %v556 = vmul.f32 %v537, 1.442695
    %v557 = vpow.pop %v556
    %v558 = vmul.f32 %v538, 1.442695
    %v559 = vpow.pop %v558
    %v560 = vmul.f32 %v539, 1.442695
    %v561 = vpow.pop %v560
    %v562 = vmul.f32 %v540, 1.442695
    %v563 = vpow.pop %v562
    %v564 = vmul.f32 %v541, 1.442695
    %v565 = vpow.pop %v564
    %v566 = vmul.f32 %v542, 1.442695
    %v567 = vpow.pop %v566
    %v568 = vmul.f32 %v543, 1.442695
    %v569 = vpow.pop %v568
    %v570 = vmul.f32 %v544, 1.442695
    %v571 = vpow.pop %v570
    %v572 = vmul.f32 %v545, 1.442695
    %v573 = vpow.pop %v572
    %v574 = vmul.f32 %v546, 1.442695
    %v575 = vpow.pop %v574
    %v576 = vmul.f32 %v547, 1.442695
    %v577 = vpow.pop %v576
    %v578 = vmul.f32 %v548, 1.442695
    %v579 = vpow.pop %v578
    %v580 = vmul.f32 %v549, 1.442695
    %v581 = vpow.pop %v580
    %v582 = vadd.f32 %v551, %v553
    %v583 = vadd.f32 %v582, %v555
    %v584 = vadd.f32 %v583, %v557
    %v585 = vrot.slane %v584, 4
    %v586 = vadd.f32 %v584, %v585
    %v587 = vrot.slane %v586, 2
    %v588 = vadd.f32 %v586, %v587
    %v589 = vrot.slane %v588, 1
    %v590 = vadd.f32 %v588, %v589
    %v591 = vadd.f32 %v559, %v561
    %v592 = vadd.f32 %v591, %v563
    %v593 = vadd.f32 %v592, %v565
    %v594 = vrot.slane %v593, 4
    %v595 = vadd.f32 %v593, %v594
    %v596 = vrot.slane %v595, 2
    %v597 = vadd.f32 %v595, %v596
    %v598 = vrot.slane %v597, 1
    %v599 = vadd.f32 %v597, %v598
    %v600 = vadd.f32 %v567, %v569
    %v601 = vadd.f32 %v600, %v571
    %v602 = vadd.f32 %v601, %v573
    %v603 = vrot.slane %v602, 4
    %v604 = vadd.f32 %v602, %v603
    %v605 = vrot.slane %v604, 2
    %v606 = vadd.f32 %v604, %v605
    %v607 = vrot.slane %v606, 1
    %v608 = vadd.f32 %v606, %v607
    %v609 = vadd.f32 %v575, %v577
    %v610 = vadd.f32 %v609, %v579
    %v611 = vadd.f32 %v610, %v581
    %v612 = vrot.slane %v611, 4
    %v613 = vadd.f32 %v611, %v612
    %v614 = vrot.slane %v613, 2
    %v615 = vadd.f32 %v613, %v614
    %v616 = vrot.slane %v615, 1
    %v617 = vadd.f32 %v615, %v616
    %v618 = vrcp.pop %v590
    %v619 = vrcp.pop %v599
    %v620 = vrcp.pop %v608
    %v621 = vrcp.pop %v617
    %v622 = vmul.f32 %v551, %v618
    %v623 = vmul.f32 %v553, %v618
    %v624 = vmul.f32 %v555, %v618
    %v625 = vmul.f32 %v557, %v618
    %v626 = vmul.f32 %v559, %v619
    %v627 = vmul.f32 %v561, %v619
    %v628 = vmul.f32 %v563, %v619
    %v629 = vmul.f32 %v565, %v619
    %v630 = vmul.f32 %v567, %v620
    %v631 = vmul.f32 %v569, %v620
    %v632 = vmul.f32 %v571, %v620
    %v633 = vmul.f32 %v573, %v620
    %v634 = vmul.f32 %v575, %v621
    %v635 = vmul.f32 %v577, %v621
    %v636 = vmul.f32 %v579, %v621
    %v637 = vmul.f32 %v581, %v621
    %v638 = vmul.f32 %v280, %v622
    %v639 = vmul.f32 %v281, %v623
    %v640 = vmul.f32 %v282, %v624
    %v641 = vmul.f32 %v283, %v625
    %v642 = vmul.f32 %v284, %v626
    %v643 = vmul.f32 %v285, %v627
    %v644 = vmul.f32 %v286, %v628
    %v645 = vmul.f32 %v287, %v629
    %v646 = vmul.f32 %v288, %v630
    %v647 = vmul.f32 %v289, %v631
    %v648 = vmul.f32 %v290, %v632
    %v649 = vmul.f32 %v291, %v633
    %v650 = vmul.f32 %v292, %v634
    %v651 = vmul.f32 %v293, %v635
    %v652 = vmul.f32 %v294, %v636
    %v653 = vmul.f32 %v295, %v637
    %v654 = vadd.f32 %v638, %v639
    %v655 = vadd.f32 %v654, %v640
    %v656 = vadd.f32 %v655, %v641
    %v657 = vrot.slane %v656, 4
    %v658 = vadd.f32 %v656, %v657
    %v659 = vrot.slane %v658, 2
    %v660 = vadd.f32 %v658, %v659
    %v661 = vrot.slane %v660, 1
    %v662 = vadd.f32 %v660, %v661
    %v663 = vadd.f32 %v642, %v643
    %v664 = vadd.f32 %v663, %v644
    %v665 = vadd.f32 %v664, %v645
    %v666 = vrot.slane %v665, 4
    %v667 = vadd.f32 %v665, %v666
    %v668 = vrot.slane %v667, 2
    %v669 = vadd.f32 %v667, %v668
    %v670 = vrot.slane %v669, 1
    %v671 = vadd.f32 %v669, %v670
    %v672 = vadd.f32 %v646, %v647
    %v673 = vadd.f32 %v672, %v648
    %v674 = vadd.f32 %v673, %v649
    %v675 = vrot.slane %v674, 4
    %v676 = vadd.f32 %v674, %v675
    %v677 = vrot.slane %v676, 2
    %v678 = vadd.f32 %v676, %v677
    %v679 = vrot.slane %v678, 1
    %v680 = vadd.f32 %v678, %v679
    %v681 = vadd.f32 %v650, %v651
    %v682 = vadd.f32 %v681, %v652
    %v683 = vadd.f32 %v682, %v653
    %v684 = vrot.slane %v683, 4
    %v685 = vadd.f32 %v683, %v684
    %v686 = vrot.slane %v685, 2
    %v687 = vadd.f32 %v685, %v686
    %v688 = vrot.slane %v687, 1
    %v689 = vadd.f32 %v687, %v688
    %v690 = vpack.c.bf16 %v662, %v662
    %v691 = vpack.c.bf16 %v671, %v671
    %v692 = vpack.c.bf16 %v680, %v680
    %v693 = vpack.c.bf16 %v689, %v689
    %v694 = vld [vmem:[%s5] sm:$0xff]
    %v695 = vld [vmem:[%s5 + $0x8] sm:$0xff]
    %v696 = vld [vmem:[%s5 + $0x10] sm:$0xff]
    %v697 = vld [vmem:[%s5 + $0x18] sm:$0xff]
    %v698 = vld [vmem:[%s5 + $0x20] sm:$0xff]
    %v699 = vld [vmem:[%s5 + $0x28] sm:$0xff]
    %v700 = vld [vmem:[%s5 + $0x30] sm:$0xff]
    %v701 = vld [vmem:[%s5 + $0x38] sm:$0xff]
    %v702 = vld [vmem:[%s5 + $0x40] sm:$0xff]
    %v703 = vld [vmem:[%s5 + $0x48] sm:$0xff]
    %v704 = vld [vmem:[%s5 + $0x50] sm:$0xff]
    %v705 = vld [vmem:[%s5 + $0x58] sm:$0xff]
    %v706 = vld [vmem:[%s5 + $0x60] sm:$0xff]
    %v707 = vld [vmem:[%s5 + $0x68] sm:$0xff]
    %v708 = vld [vmem:[%s5 + $0x70] sm:$0xff]
    %v709 = vld [vmem:[%s5 + $0x78] sm:$0xff]
    %v710 = vld [vmem:[%s6] sm:$0x3]
    %v712 = vlaneseq
    %v713 = vshrl.u32 %v712, 7
    %v714 = vsub.s32 0, %v713
    %v715 = vrot.slane %v710, %v714
    %v716 = vlaneseq
    %v717 = vshrl.u32 %v716, 7
    %v718 = vsub.s32 1, %v717
    %v719 = vrot.slane %v710, %v718
    %v726 = vunpack.c.l.b16 %v690
    %v727 = vunpack.c.l.b16 %v691
    %v728 = vunpack.c.l.b16 %v692
    %v729 = vunpack.c.l.b16 %v693
    %vm730 = vcmask 1041409
    %v731 = vsel %vm730, %v727, %v726
    %vm732 = vcmask 1042434
    %v733 = vsel %vm732, %v728, %v731
    %vm734 = vcmask 1043459
    %v735 = vsel %vm734, %v729, %v733
    %v736 = vpack.c.b16 %v735, %v735
    %v754 = vunpack.c.l.b16 %v694
    %v755 = vunpack.c.h.b16 %v694
    %v756 = vunpack.c.l.b16 %v695
    %v757 = vunpack.c.h.b16 %v695
    %v758 = vunpack.c.l.b16 %v696
    %v759 = vunpack.c.h.b16 %v696
    %v760 = vunpack.c.l.b16 %v697
    %v761 = vunpack.c.h.b16 %v697
    %v762 = vunpack.c.l.b16 %v698
    %v763 = vunpack.c.h.b16 %v698
    %v764 = vunpack.c.l.b16 %v699
    %v765 = vunpack.c.h.b16 %v699
    %v766 = vunpack.c.l.b16 %v700
    %v767 = vunpack.c.h.b16 %v700
    %v768 = vunpack.c.l.b16 %v701
    %v769 = vunpack.c.h.b16 %v701
    %v770 = vunpack.c.l.b16 %v702
    %v771 = vunpack.c.h.b16 %v702
    %v772 = vunpack.c.l.b16 %v703
    %v773 = vunpack.c.h.b16 %v703
    %v774 = vunpack.c.l.b16 %v704
    %v775 = vunpack.c.h.b16 %v704
    %v776 = vunpack.c.l.b16 %v705
    %v777 = vunpack.c.h.b16 %v705
    %v778 = vunpack.c.l.b16 %v706
    %v779 = vunpack.c.h.b16 %v706
    %v780 = vunpack.c.l.b16 %v707
    %v781 = vunpack.c.h.b16 %v707
    %v782 = vunpack.c.l.b16 %v708
    %v783 = vunpack.c.h.b16 %v708
    %v784 = vunpack.c.l.b16 %v709
    %v785 = vunpack.c.h.b16 %v709
    %v786 = vpack.c.b16 %v756, %v754
    %v787 = vpack.c.b16 %v757, %v755
    %v788 = vpack.c.b16 %v760, %v758
    %v789 = vpack.c.b16 %v761, %v759
    %v790 = vpack.c.b16 %v764, %v762
    %v791 = vpack.c.b16 %v765, %v763
    %v792 = vpack.c.b16 %v768, %v766
    %v793 = vpack.c.b16 %v769, %v767
    %v794 = vpack.c.b16 %v772, %v770
    %v795 = vpack.c.b16 %v773, %v771
    %v796 = vpack.c.b16 %v776, %v774
    %v797 = vpack.c.b16 %v777, %v775
    %v798 = vpack.c.b16 %v780, %v778
    %v799 = vpack.c.b16 %v781, %v779
    %v800 = vpack.c.b16 %v784, %v782
    %v801 = vpack.c.b16 %v785, %v783
    %818 = vmatprep.subr.bf16.mxu0 %v787
    %819 = vmatpush1.bf16.msra.mxu0 %v786
    %820 = vmatprep.subr.bf16.mxu0 %v789
    %821 = vmatpush1.bf16.msra.mxu0 %v788
    %822 = vmatprep.subr.bf16.mxu0 %v791
    %823 = vmatpush1.bf16.msra.mxu0 %v790
    %824 = vmatprep.subr.bf16.mxu0 %v793
    %825 = vmatpush1.bf16.msra.mxu0 %v792
    %826 = vmatprep.subr.bf16.mxu0 %v795
    %827 = vmatpush1.bf16.msra.mxu0 %v794
    %828 = vmatprep.subr.bf16.mxu0 %v797
    %829 = vmatpush1.bf16.msra.mxu0 %v796
    %830 = vmatprep.subr.bf16.mxu0 %v799
    %831 = vmatpush1.bf16.msra.mxu0 %v798
    %832 = vmatprep.subr.bf16.mxu0 %v801
    %833 = vmatpush1.bf16.msra.mxu0 %v800
    %834 = vmatprep.subr.bf16.mxu0 0
    %835 = vmatpush1.bf16.msra.mxu0 0
    %836 = vmatprep.subr.bf16.mxu0 0
    %837 = vmatpush1.bf16.msra.mxu0 0
    %838 = vmatprep.subr.bf16.mxu0 0
    %839 = vmatpush1.bf16.msra.mxu0 0
    %840 = vmatprep.subr.bf16.mxu0 0
    %841 = vmatpush1.bf16.msra.mxu0 0
    %842 = vmatprep.subr.bf16.mxu0 0
    %843 = vmatpush1.bf16.msra.mxu0 0
    %844 = vmatprep.subr.bf16.mxu0 0
    %845 = vmatpush1.bf16.msra.mxu0 0
    %846 = vmatprep.subr.bf16.mxu0 0
    %847 = vmatpush1.bf16.msra.mxu0 0
    %848 = vmatprep.subr.bf16.mxu0 0
    %849 = vmatpush1.bf16.msra.mxu0 0
    %850 = vmatprep.mubr.bf16.mxu0 0
    %851 = vmatmul.mubr.bf16.gmra.mrb[0].mxu0 %v736
    %v852 = vpop.f32.mrb[0].mxu0
    %v853 = vadd.f32 %v715, %v852
    %v854 = vpop.f32.mrb[0].mxu0
    %v855 = vadd.f32 %v719, %v854
    %v856 = vpop.f32.mrb[0].mxu0
    %v857 = vpop.f32.mrb[0].mxu0
    %858 = vdwg.mxu0
    %v859 = vmax.f32 %v853, 0.0
    %v860 = vmax.f32 %v855, 0.0
    %v861 = vpack.c.bf16 %v859, %v859
    %v862 = vpack.c.bf16 %v860, %v860
    %v863 = vld [vmem:[%s7] sm:$0xf]
    %v864 = vld [vmem:[%s7 + $0x4] sm:$0xf]
    %v865 = vld [vmem:[%s7 + $0x8] sm:$0xf]
    %v866 = vld [vmem:[%s7 + $0xc] sm:$0xf]
    %v867 = vld [vmem:[%s7 + $0x10] sm:$0xf]
    %v868 = vld [vmem:[%s7 + $0x14] sm:$0xf]
    %v869 = vld [vmem:[%s7 + $0x18] sm:$0xf]
    %v870 = vld [vmem:[%s7 + $0x1c] sm:$0xf]
    %v871 = vld [vmem:[%s7 + $0x20] sm:$0xf]
    %v872 = vld [vmem:[%s7 + $0x24] sm:$0xf]
    %v873 = vld [vmem:[%s7 + $0x28] sm:$0xf]
    %v874 = vld [vmem:[%s7 + $0x2c] sm:$0xf]
    %v875 = vld [vmem:[%s7 + $0x30] sm:$0xf]
    %v876 = vld [vmem:[%s7 + $0x34] sm:$0xf]
    %v877 = vld [vmem:[%s7 + $0x38] sm:$0xf]
    %v878 = vld [vmem:[%s7 + $0x3c] sm:$0xf]
    %v879 = vld [vmem:[%s7 + $0x40] sm:$0xf]
    %v880 = vld [vmem:[%s7 + $0x44] sm:$0xf]
    %v881 = vld [vmem:[%s7 + $0x48] sm:$0xf]
    %v882 = vld [vmem:[%s7 + $0x4c] sm:$0xf]
    %v883 = vld [vmem:[%s7 + $0x50] sm:$0xf]
    %v884 = vld [vmem:[%s7 + $0x54] sm:$0xf]
    %v885 = vld [vmem:[%s7 + $0x58] sm:$0xf]
    %v886 = vld [vmem:[%s7 + $0x5c] sm:$0xf]
    %v887 = vld [vmem:[%s7 + $0x60] sm:$0xf]
    %v888 = vld [vmem:[%s7 + $0x64] sm:$0xf]
    %v889 = vld [vmem:[%s7 + $0x68] sm:$0xf]
    %v890 = vld [vmem:[%s7 + $0x6c] sm:$0xf]
    %v891 = vld [vmem:[%s7 + $0x70] sm:$0xf]
    %v892 = vld [vmem:[%s7 + $0x74] sm:$0xf]
    %v893 = vld [vmem:[%s7 + $0x78] sm:$0xf]
    %v894 = vld [vmem:[%s7 + $0x7c] sm:$0xf]
    %v895 = vld [vmem:[%s8] sm:$0x1]
    %v897 = vlaneseq
    %v898 = vshrl.u32 %v897, 7
    %v899 = vsub.s32 0, %v898
    %v900 = vrot.slane %v895, %v899
    %v934 = vunpack.c.l.b16 %v863
    %v935 = vunpack.c.l.b16 %v864
    %v936 = vunpack.c.l.b16 %v865
    %v937 = vunpack.c.l.b16 %v866
    %v938 = vunpack.c.l.b16 %v867
    %v939 = vunpack.c.l.b16 %v868
    %v940 = vunpack.c.l.b16 %v869
    %v941 = vunpack.c.l.b16 %v870
    %v942 = vunpack.c.l.b16 %v871
    %v943 = vunpack.c.l.b16 %v872
    %v944 = vunpack.c.l.b16 %v873
    %v945 = vunpack.c.l.b16 %v874
    %v946 = vunpack.c.l.b16 %v875
    %v947 = vunpack.c.l.b16 %v876
    %v948 = vunpack.c.l.b16 %v877
    %v949 = vunpack.c.l.b16 %v878
    %v950 = vunpack.c.l.b16 %v879
    %v951 = vunpack.c.l.b16 %v880
    %v952 = vunpack.c.l.b16 %v881
    %v953 = vunpack.c.l.b16 %v882
    %v954 = vunpack.c.l.b16 %v883
    %v955 = vunpack.c.l.b16 %v884
    %v956 = vunpack.c.l.b16 %v885
    %v957 = vunpack.c.l.b16 %v886
    %v958 = vunpack.c.l.b16 %v887
    %v959 = vunpack.c.l.b16 %v888
    %v960 = vunpack.c.l.b16 %v889
    %v961 = vunpack.c.l.b16 %v890
    %v962 = vunpack.c.l.b16 %v891
    %v963 = vunpack.c.l.b16 %v892
    %v964 = vunpack.c.l.b16 %v893
    %v965 = vunpack.c.l.b16 %v894
    %v966 = vpack.c.b16 %v935, %v934
    %v967 = vpack.c.b16 %v937, %v936
    %v968 = vpack.c.b16 %v939, %v938
    %v969 = vpack.c.b16 %v941, %v940
    %v970 = vpack.c.b16 %v943, %v942
    %v971 = vpack.c.b16 %v945, %v944
    %v972 = vpack.c.b16 %v947, %v946
    %v973 = vpack.c.b16 %v949, %v948
    %v974 = vpack.c.b16 %v951, %v950
    %v975 = vpack.c.b16 %v953, %v952
    %v976 = vpack.c.b16 %v955, %v954
    %v977 = vpack.c.b16 %v957, %v956
    %v978 = vpack.c.b16 %v959, %v958
    %v979 = vpack.c.b16 %v961, %v960
    %v980 = vpack.c.b16 %v963, %v962
    %v981 = vpack.c.b16 %v965, %v964
    %998 = vmatprep.subr.bf16.mxu0 0
    %999 = vmatpush1.bf16.msra.mxu0 %v966
    %1000 = vmatprep.subr.bf16.mxu0 0
    %1001 = vmatpush1.bf16.msra.mxu0 %v967
    %1002 = vmatprep.subr.bf16.mxu0 0
    %1003 = vmatpush1.bf16.msra.mxu0 %v968
    %1004 = vmatprep.subr.bf16.mxu0 0
    %1005 = vmatpush1.bf16.msra.mxu0 %v969
    %1006 = vmatprep.subr.bf16.mxu0 0
    %1007 = vmatpush1.bf16.msra.mxu0 %v970
    %1008 = vmatprep.subr.bf16.mxu0 0
    %1009 = vmatpush1.bf16.msra.mxu0 %v971
    %1010 = vmatprep.subr.bf16.mxu0 0
    %1011 = vmatpush1.bf16.msra.mxu0 %v972
    %1012 = vmatprep.subr.bf16.mxu0 0
    %1013 = vmatpush1.bf16.msra.mxu0 %v973
    %1014 = vmatprep.subr.bf16.mxu0 0
    %1015 = vmatpush1.bf16.msra.mxu0 %v974
    %1016 = vmatprep.subr.bf16.mxu0 0
    %1017 = vmatpush1.bf16.msra.mxu0 %v975
    %1018 = vmatprep.subr.bf16.mxu0 0
    %1019 = vmatpush1.bf16.msra.mxu0 %v976
    %1020 = vmatprep.subr.bf16.mxu0 0
    %1021 = vmatpush1.bf16.msra.mxu0 %v977
    %1022 = vmatprep.subr.bf16.mxu0 0
    %1023 = vmatpush1.bf16.msra.mxu0 %v978
    %1024 = vmatprep.subr.bf16.mxu0 0
    %1025 = vmatpush1.bf16.msra.mxu0 %v979
    %1026 = vmatprep.subr.bf16.mxu0 0
    %1027 = vmatpush1.bf16.msra.mxu0 %v980
    %1028 = vmatprep.subr.bf16.mxu0 0
    %1029 = vmatpush1.bf16.msra.mxu0 %v981
    %1030 = vmatprep.mubr.bf16.mxu0 %v862
    %1031 = vmatmul.mubr.bf16.gmra.mrb[0].mxu0 %v861
    %v1032 = vpop.f32.mrb[0].mxu0
    %v1033 = vadd.f32 %v900, %v1032
    %v1034 = vpop.f32.mrb[0].mxu0
    %v1035 = vpop.f32.mrb[0].mxu0
    %v1036 = vpop.f32.mrb[0].mxu0
    %1037 = vdwg.mxu0
    %v1038 = vmax.f32 %v1033, 0.0
    %v1039 = vpack.c.bf16 %v1038, %v1038
    %v1040 = vld [vmem:[%s9] sm:$0xf]
    %v1041 = vld [vmem:[%s9 + $0x4] sm:$0xf]
    %v1042 = vld [vmem:[%s9 + $0x8] sm:$0xf]
    %v1043 = vld [vmem:[%s9 + $0xc] sm:$0xf]
    %v1044 = vld [vmem:[%s9 + $0x10] sm:$0xf]
    %v1045 = vld [vmem:[%s9 + $0x14] sm:$0xf]
    %v1046 = vld [vmem:[%s9 + $0x18] sm:$0xf]
    %v1047 = vld [vmem:[%s9 + $0x1c] sm:$0xf]
    %v1048 = vld [vmem:[%s9 + $0x20] sm:$0xf]
    %v1049 = vld [vmem:[%s9 + $0x24] sm:$0xf]
    %v1050 = vld [vmem:[%s9 + $0x28] sm:$0xf]
    %v1051 = vld [vmem:[%s9 + $0x2c] sm:$0xf]
    %v1052 = vld [vmem:[%s9 + $0x30] sm:$0xf]
    %v1053 = vld [vmem:[%s9 + $0x34] sm:$0xf]
    %v1054 = vld [vmem:[%s9 + $0x38] sm:$0xf]
    %v1055 = vld [vmem:[%s9 + $0x3c] sm:$0xf]
    %v1056 = vld [vmem:[%s10] sm:$0x1]
    %v1058 = vlaneseq
    %v1059 = vshrl.u32 %v1058, 7
    %v1060 = vsub.s32 0, %v1059
    %v1061 = vrot.slane %v1056, %v1060
    %v1079 = vunpack.c.l.b16 %v1040
    %v1080 = vunpack.c.l.b16 %v1041
    %v1081 = vunpack.c.l.b16 %v1042
    %v1082 = vunpack.c.l.b16 %v1043
    %v1083 = vunpack.c.l.b16 %v1044
    %v1084 = vunpack.c.l.b16 %v1045
    %v1085 = vunpack.c.l.b16 %v1046
    %v1086 = vunpack.c.l.b16 %v1047
    %v1087 = vunpack.c.l.b16 %v1048
    %v1088 = vunpack.c.l.b16 %v1049
    %v1089 = vunpack.c.l.b16 %v1050
    %v1090 = vunpack.c.l.b16 %v1051
    %v1091 = vunpack.c.l.b16 %v1052
    %v1092 = vunpack.c.l.b16 %v1053
    %v1093 = vunpack.c.l.b16 %v1054
    %v1094 = vunpack.c.l.b16 %v1055
    %v1095 = vpack.c.b16 %v1080, %v1079
    %v1096 = vpack.c.b16 %v1082, %v1081
    %v1097 = vpack.c.b16 %v1084, %v1083
    %v1098 = vpack.c.b16 %v1086, %v1085
    %v1099 = vpack.c.b16 %v1088, %v1087
    %v1100 = vpack.c.b16 %v1090, %v1089
    %v1101 = vpack.c.b16 %v1092, %v1091
    %v1102 = vpack.c.b16 %v1094, %v1093
    %1111 = vmatprep.subr.bf16.mxu0 0
    %1112 = vmatpush1.bf16.msra.mxu0 %v1095
    %1113 = vmatprep.subr.bf16.mxu0 0
    %1114 = vmatpush1.bf16.msra.mxu0 %v1096
    %1115 = vmatprep.subr.bf16.mxu0 0
    %1116 = vmatpush1.bf16.msra.mxu0 %v1097
    %1117 = vmatprep.subr.bf16.mxu0 0
    %1118 = vmatpush1.bf16.msra.mxu0 %v1098
    %1119 = vmatprep.subr.bf16.mxu0 0
    %1120 = vmatpush1.bf16.msra.mxu0 %v1099
    %1121 = vmatprep.subr.bf16.mxu0 0
    %1122 = vmatpush1.bf16.msra.mxu0 %v1100
    %1123 = vmatprep.subr.bf16.mxu0 0
    %1124 = vmatpush1.bf16.msra.mxu0 %v1101
    %1125 = vmatprep.subr.bf16.mxu0 0
    %1126 = vmatpush1.bf16.msra.mxu0 %v1102
    %1127 = vmatprep.subr.bf16.mxu0 0
    %1128 = vmatpush1.bf16.msra.mxu0 0
    %1129 = vmatprep.subr.bf16.mxu0 0
    %1130 = vmatpush1.bf16.msra.mxu0 0
    %1131 = vmatprep.subr.bf16.mxu0 0
    %1132 = vmatpush1.bf16.msra.mxu0 0
    %1133 = vmatprep.subr.bf16.mxu0 0
    %1134 = vmatpush1.bf16.msra.mxu0 0
    %1135 = vmatprep.subr.bf16.mxu0 0
    %1136 = vmatpush1.bf16.msra.mxu0 0
    %1137 = vmatprep.subr.bf16.mxu0 0
    %1138 = vmatpush1.bf16.msra.mxu0 0
    %1139 = vmatprep.subr.bf16.mxu0 0
    %1140 = vmatpush1.bf16.msra.mxu0 0
    %1141 = vmatprep.subr.bf16.mxu0 0
    %1142 = vmatpush1.bf16.msra.mxu0 0
    %1143 = vmatprep.mubr.bf16.mxu0 0
    %1144 = vmatmul.mubr.bf16.gmra.mrb[0].mxu0 %v1039
    %v1145 = vpop.f32.mrb[0].mxu0
    %v1146 = vadd.f32 %v1061, %v1145
    %v1147 = vpop.f32.mrb[0].mxu0
    %v1148 = vpop.f32.mrb[0].mxu0
    %v1149 = vpop.f32.mrb[0].mxu0
    %1150 = vdwg.mxu0
    %1151 = vst [vmem:[#allocation2] sm:$0xf] %v1146
    // Predicated region
    $region46: #{forward.1} parent=1 // pred_check
      _
    $region47: #{forward.1} parent=1 // pred_check_branch
      %1153 = sbr.rel (0) target = $region49
    $region48: #{forward.1} parent=1 // pred_region
      %s1155 = ssub.s32 64, 64
      %1156 = vsyncadd [#allocation3], %s1155
      %s1158 = sshll.u32 [#allocation2], 4
      %s1159 = int_to_ptr.vmem [resolvable:$true] %s1158
      %1161 = dma.vmem_to_hbm [thread:$0]  %s1159, 64, %s11, [#allocation3]
    $region49: #{forward.1} parent=1 // pred_fallthru
      _
    // Predicated region
    $region50: #{forward.1} parent=1 // pred_check
      _
    $region51: #{forward.1} parent=1 // pred_check_branch
      %1163 = sbr.rel (0) target = $region53
    $region52: #{forward.1} parent=1 // pred_region
      %1164 = dma.done [#allocation3], 64
    $region53: #{forward.1} parent=1 // pred_fallthru
      _
    %1165 = vsyncpa [#allocation3], 1

</llo_original>
